<compile_context>
chip_gen: v5e
topology: v5e:2x2
jax: 0.10.0
libtpu: 0.0.40
codegen_flags: <defaults>
</compile_context>

<pallas_src>
import numpy as np

import jax
import jax.numpy as jnp
from jax.experimental import pallas as pl
from jax.experimental.pallas import tpu as pltpu


# ----------------------------------------------------------------------------
# Fused conv block:  bf16 matmul (f32 acc) + InstanceNorm + affine + LeakyReLU
# Lane-dense: the kernel computes (Cout, P) with spatial P on the lane axis.
# ----------------------------------------------------------------------------
def _make_conv_kernel(apply_norm, apply_relu, eps, neg_slope=0.2):
    def kernel(*refs):
        it = iter(refs)
        p_ref = next(it)                              # (1, K, P)    bf16 transposed patches
        w_ref = next(it)                              # (Cout, K)    bf16 weights
        g_ref = next(it) if apply_norm else None      # (Cout, 1)    f32
        b_ref = next(it) if apply_norm else None      # (Cout, 1)    f32
        o_ref = next(it)                              # (1, Cout, P) f32

        # Conv as a single MXU matmul, f32 accumulation.
        y = jnp.dot(w_ref[...], p_ref[0], preferred_element_type=jnp.float32)

        if apply_norm:
            # InstanceNorm2d: per-(sample, channel) stats over the spatial (lane) axis.
            # Single pass: var = E[y^2] - E[y]^2, clamped against f32 cancellation.
            inv_p = 1.0 / y.shape[-1]
            mean = jnp.sum(y, axis=-1, keepdims=True) * inv_p
            ex2 = jnp.sum(y * y, axis=-1, keepdims=True) * inv_p
            var = jnp.maximum(ex2 - mean * mean, 0.0)
            y = (y - mean) * jax.lax.rsqrt(var + eps)
            y = y * g_ref[...] + b_ref[...]           # (Cout, 1) broadcasts over lanes

        if apply_relu:
            y = jnp.where(y >= 0, y, neg_slope * y)   # LeakyReLU(0.2)

        o_ref[0] = y.astype(o_ref.dtype)

    return kernel


def _im2col_t(x, kh, kw, stride, padding, dilation):
    """x: (N, C, H, W) -> transposed patches (N, C*kh*kw, Ho*Wo); K ordered (C, kh, kw).

    The spatial axis stays last/contiguous the whole way (stack on an inner axis +
    reshape), so no transposes are needed on either side of the kernel.
    """
    # TODO(synk): the remaining kh*kw im2col expansion still round-trips HBM; next step
    # is an in-kernel NHWC conv (kh*kw shifted matmuls) for the large early layers.
    N, C, H, W = x.shape
    xp = jnp.pad(x, ((0, 0), (0, 0), (padding, padding), (padding, padding)))
    Hp, Wp = H + 2 * padding, W + 2 * padding
    Ho = (Hp - dilation * (kh - 1) - 1) // stride + 1
    Wo = (Wp - dilation * (kw - 1) - 1) // stride + 1
    cols = []
    for i in range(kh):
        for j in range(kw):
            r0, c0 = i * dilation, j * dilation
            cols.append(xp[:, :,
                           r0:r0 + stride * (Ho - 1) + 1:stride,
                           c0:c0 + stride * (Wo - 1) + 1:stride])   # (N, C, Ho, Wo)
    pat = jnp.stack(cols, axis=2)                                   # (N, C, kh*kw, Ho, Wo)
    return pat.reshape(N, C * kh * kw, Ho * Wo), Ho, Wo


def fused_conv_block(x, weight, gamma=None, beta=None, *,
                     stride=1, padding=0, dilation=1,
                     apply_norm=False, apply_relu=False, eps=1e-6, p_tile=256):
    """x: (N, Cin, H, W) f32, weight: (Cout, Cin, kh, kw) -> (N, Cout, Ho, Wo) f32."""
    Cout, Cin, kh, kw = weight.shape
    # bf16 patches/weights: halves patch DMA bytes, hits the bf16 MXU fast path.
    patches, Ho, Wo = _im2col_t(x.astype(jnp.bfloat16), kh, kw, stride, padding, dilation)
    N, K, P = patches.shape
    w2d = weight.reshape(Cout, K).astype(jnp.bfloat16)

    kernel = _make_conv_kernel(apply_norm, apply_relu, eps)

    if apply_norm:
        # InstanceNorm needs full-spatial statistics -> one grid step per sample with the
        # whole (K, P) tile resident in VMEM (small at these channel counts / resolutions).
        # TODO(synk): for large resolutions, tile P with a two-pass (stats, then normalize)
        # grid and set vmem_limit_bytes per TPU generation (v7x only has 64 MiB VMEM).
        grid = (N,)
        in_specs = [
            pl.BlockSpec((1, K, P), lambda n: (n, 0, 0)),
            pl.BlockSpec((Cout, K), lambda n: (0, 0)),
            pl.BlockSpec((Cout, 1), lambda n: (0, 0)),
            pl.BlockSpec((Cout, 1), lambda n: (0, 0)),
        ]
        out_specs = pl.BlockSpec((1, Cout, P), lambda n: (n, 0, 0))
        args = (patches, w2d, gamma.reshape(Cout, 1), beta.reshape(Cout, 1))
        dims = ("parallel",)
    else:
        # No cross-spatial coupling -> tile the lane (P) axis: pipeline depth for the big
        # layer-0 patch DMA and >= 2 parallel iterations even at batch=1 (v7x megacore).
        tp = P if P <= p_tile else p_tile              # p_tile is a multiple of 128
        grid = (N, pl.cdiv(P, tp))
        in_specs = [
            pl.BlockSpec((1, K, tp), lambda n, p: (n, 0, p)),
            pl.BlockSpec((Cout, K), lambda n, p: (0, 0)),
        ]
        out_specs = pl.BlockSpec((1, Cout, tp), lambda n, p: (n, 0, p))
        args = (patches, w2d)
        dims = ("parallel", "parallel")

    out = pl.pallas_call(
        kernel,
        out_shape=jax.ShapeDtypeStruct((N, Cout, P), jnp.float32),
        grid=grid,
        in_specs=in_specs,
        out_specs=out_specs,
        compiler_params=pltpu.CompilerParams(dimension_semantics=dims),
    )(*args)
    # (N, Cout, P) is already NCHW-flat: a free reshape, no transpose.
    return out.reshape(N, Cout, Ho, Wo)


# ----------------------------------------------------------------------------
# Fused tail: downsample (conv x2) + dilated conv (+ residual) + lastconv in a
# single pallas_call. Spatial sizes are tiny (P in {25, 4, 4, 4}); the per-layer
# im2col happens in-kernel via matmuls against static 0/1 gather matrices, so
# the tail costs one launch and zero intermediate HBM traffic.
# ----------------------------------------------------------------------------
def _gather_mats(Hin, Win, k, stride, padding, dilation):
    """Per-tap 0/1 gather matrices G[t]: flat (Hin*Win) -> flat (Ho*Wo), padding folded in."""
    Ho = (Hin + 2 * padding - dilation * (k - 1) - 1) // stride + 1
    Wo = (Win + 2 * padding - dilation * (k - 1) - 1) // stride + 1
    G = np.zeros((k * k, Hin * Win, Ho * Wo), np.float32)
    for i in range(k):
        for j in range(k):
            t = i * k + j
            for ho in range(Ho):
                hs = ho * stride + i * dilation - padding
                if hs < 0 or hs >= Hin:
                    continue
                for wo in range(Wo):
                    ws = wo * stride + j * dilation - padding
                    if ws < 0 or ws >= Win:
                        continue
                    G[t, hs * Win + ws, ho * Wo + wo] = 1.0
    return G, Ho, Wo


def _make_tail_kernel(taps, eps, neg_slope=0.2):
    t4, t5, t6, t7 = taps

    def conv_taps(x, g_ref, w_ref, ntap):
        # conv = sum_t W[t] @ (x @ G[t])   (in-VMEM im2col via gather matmuls)
        acc = None
        for t in range(ntap):
            gathered = jnp.dot(x, g_ref[t], preferred_element_type=jnp.float32)
            part = jnp.dot(w_ref[t], gathered, preferred_element_type=jnp.float32)
            acc = part if acc is None else acc + part
        return acc

    def inorm_lrelu(y, g_ref, b_ref):
        inv_p = 1.0 / y.shape[-1]
        mean = jnp.sum(y, axis=-1, keepdims=True) * inv_p
        ex2 = jnp.sum(y * y, axis=-1, keepdims=True) * inv_p
        var = jnp.maximum(ex2 - mean * mean, 0.0)
        y = (y - mean) * jax.lax.rsqrt(var + eps)
        y = y * g_ref[...] + b_ref[...]
        return jnp.where(y >= 0, y, neg_slope * y)

    def kernel(x_ref, g4, w4, ga4, be4, g5, w5, ga5, be5,
               g6, w6, ga6, be6, g7, w7, o_ref):
        x = x_ref[0]                                              # (C3, P3)
        y = inorm_lrelu(conv_taps(x, g4, w4, t4), ga4, be4)       # downsample conv 1
        y = inorm_lrelu(conv_taps(y, g5, w5, t5), ga5, be5)       # downsample conv 2
        d = inorm_lrelu(conv_taps(y, g6, w6, t6), ga6, be6)       # dilated branch
        y = y + d                                                 # x + dilated(x)
        o_ref[0] = conv_taps(y, g7, w7, t7).astype(o_ref.dtype)   # lastconv (Cout=1)

    return kernel


def fused_tail(x3, tail_params, eps=1e-6):
    """x3: (N, C3, H3, W3); tail_params = [downsample0, downsample1, dilated, lastconv]."""
    N, C3, H, W = x3.shape
    x = x3.reshape(N, C3, H * W)

    args = [x]
    in_specs = [pl.BlockSpec((1, C3, H * W), lambda n: (n, 0, 0))]
    taps = []
    h, w = H, W
    for lp in tail_params:
        k = lp['k']
        G, h, w = _gather_mats(h, w, k, lp['s'], lp['p'], lp['d'])
        cout, cin = lp['w'].shape[0], lp['w'].shape[1]
        wt = jnp.transpose(lp['w'], (2, 3, 0, 1)).reshape(k * k, cout, cin)
        gj = jnp.asarray(G)
        args += [gj, wt]
        in_specs += [pl.BlockSpec(gj.shape, lambda n: (0, 0, 0)),
                     pl.BlockSpec(wt.shape, lambda n: (0, 0, 0))]
        if lp['norm']:
            args += [lp['gamma'].reshape(cout, 1), lp['beta'].reshape(cout, 1)]
            in_specs += [pl.BlockSpec((cout, 1), lambda n: (0, 0)),
                         pl.BlockSpec((cout, 1), lambda n: (0, 0))]
        taps.append(k * k)

    p_out = h * w
    out = pl.pallas_call(
        _make_tail_kernel(tuple(taps), eps),
        out_shape=jax.ShapeDtypeStruct((N, 1, p_out), jnp.float32),
        grid=(N,),
        in_specs=in_specs,
        out_specs=pl.BlockSpec((1, 1, p_out), lambda n: (n, 0, 0)),
        compiler_params=pltpu.CompilerParams(dimension_semantics=("parallel",)),
    )(*args)
    return out.reshape(N, 1, h, w)


# ----------------------------------------------------------------------------
# Parameters and forward pass (matches NLayerDc with use_bias=False, eps=1e-6).
# ----------------------------------------------------------------------------
def init_params(key, input_nc=1, ndf=8, n_layers=3):
    """Deterministic synthetic parameters matching NLayerDc's layer shapes."""
    specs = []
    # self.model
    specs.append(dict(cin=input_nc, cout=ndf, k=4, s=2, p=2, d=1, norm=False, relu=True))
    nf_mult = 1
    for n in range(1, n_layers):
        nf_prev, nf_mult = nf_mult, min(2 ** n, 8)
        specs.append(dict(cin=ndf * nf_prev, cout=ndf * nf_mult, k=4, s=2, p=2, d=1,
                          norm=True, relu=True))
    nf_prev, nf_mult = nf_mult, min(2 ** n_layers, 8)
    specs.append(dict(cin=ndf * nf_prev, cout=ndf * 4, k=4, s=1, p=2, d=1,
                      norm=True, relu=True))
    # self.downsample
    specs.append(dict(cin=ndf * 4, cout=ndf * nf_mult, k=4, s=2, p=1, d=1,
                      norm=True, relu=True))
    specs.append(dict(cin=ndf * nf_mult, cout=ndf * nf_mult, k=4, s=2, p=1, d=1,
                      norm=True, relu=True))
    # self.dilated (residual added inside the fused tail kernel)
    specs.append(dict(cin=ndf * nf_mult, cout=ndf * nf_mult, k=3, s=1, p=2, d=2,
                      norm=True, relu=True))
    # self.lastconv
    specs.append(dict(cin=ndf * nf_mult, cout=1, k=3, s=1, p=1, d=1,
                      norm=False, relu=False))

    keys = jax.random.split(key, len(specs))
    params = []
    for kk, sp in zip(keys, specs):
        w = 0.02 * jax.random.normal(kk, (sp['cout'], sp['cin'], sp['k'], sp['k']),
                                     jnp.float32)
        gamma = jnp.ones((sp['cout'],), jnp.float32) if sp['norm'] else None
        beta = jnp.zeros((sp['cout'],), jnp.float32) if sp['norm'] else None
        params.append(dict(w=w, gamma=gamma, beta=beta, **sp))
    return params


def nlayer_dc_forward(params, x, eps=1e-6):
    # self.model: layers 0..3 — one lane-dense fused Pallas conv kernel per layer.
    for lp in params[:4]:
        x = fused_conv_block(x, lp['w'], lp['gamma'], lp['beta'],
                             stride=lp['s'], padding=lp['p'], dilation=lp['d'],
                             apply_norm=lp['norm'], apply_relu=lp['relu'], eps=eps)
    # self.downsample + (x + self.dilated(x)) + self.lastconv — single fused tail kernel.
    return fused_tail(x, params[4:], eps=eps)


if __name__ == "__main__":
    key = jax.random.PRNGKey(0)
    k_x, k_p = jax.random.split(key)
    # small shapes: batch=2, input_nc=1, spatial=64, ndf=8 (scaled-down NLayerDc)
    x = jax.random.normal(k_x, (2, 1, 64, 64), jnp.float32)
    params = init_params(k_p, input_nc=1, ndf=8, n_layers=3)

    out = nlayer_dc_forward(params, x, eps=1e-6)
    out = jax.block_until_ready(out)
    assert out.shape == (2, 1, 2, 2), out.shape
    assert out.dtype == jnp.float32
    assert bool(jnp.all(jnp.isfinite(out)))
    print("KERNEL_OK")
</pallas_src>

<mosaic_0001>
module attributes {stable_mosaic.version = 11 : i64} {
  func.func @kernel(%arg0: i32, %arg1: i32, %arg2: memref<1x16x256xbf16, #tpu.memory_space<vmem>>, %arg3: memref<8x16xbf16, #tpu.memory_space<vmem>>, %arg4: memref<1x8x256xf32, #tpu.memory_space<vmem>>) attributes {dimension_semantics = [#tpu.dimension_semantics<parallel>, #tpu.dimension_semantics<parallel>], iteration_bounds = array<i64: 2, 5>, scalar_prefetch = 0 : i64, scratch_operands = 0 : i64, tpu.core_type = #tpu.core_type<tc>, window_params = [{transform_indices = @transform_0, window_bounds = array<i64: 1, 16, 256>}, {pipeline_mode = #tpu.pipeline_mode<synchronous>, transform_indices = @transform_1, window_bounds = array<i64: 8, 16>}, {transform_indices = @transform_2, window_bounds = array<i64: 1, 8, 256>}]} {
    %c0 = arith.constant 0 : index
    %c0_0 = arith.constant 0 : index
    %0 = vector.load %arg3[%c0, %c0_0] : memref<8x16xbf16, #tpu.memory_space<vmem>>, vector<8x16xbf16>
    %c0_1 = arith.constant 0 : index
    %c0_2 = arith.constant 0 : index
    %c0_3 = arith.constant 0 : index
    %1 = vector.load %arg2[%c0_1, %c0_2, %c0_3] : memref<1x16x256xbf16, #tpu.memory_space<vmem>>, vector<1x16x256xbf16>
    %2 = vector.shape_cast %1 : vector<1x16x256xbf16> to vector<16x256xbf16>
    %cst = arith.constant dense<0.000000e+00> : vector<8x256xf32>
    %3 = tpu.matmul %0, %2, %cst {dimension_numbers = #tpu.dot_dimension_numbers<[1], [0], [0], [1], [0, 0, 1, 1], [], []>} : vector<8x16xbf16>, vector<16x256xbf16>, vector<8x256xf32> -> vector<8x256xf32>
    %cst_4 = arith.constant 0.000000e+00 : f32
    %4 = vector.broadcast %cst_4 : f32 to vector<8x256xf32>
    %5 = arith.cmpf oge, %3, %4 : vector<8x256xf32>
    %cst_5 = arith.constant 2.000000e-01 : f32
    %6 = vector.broadcast %cst_5 : f32 to vector<8x256xf32>
    %7 = arith.mulf %6, %3 : vector<8x256xf32>
    %8 = arith.select %5, %3, %7 : vector<8x256xi1>, vector<8x256xf32>
    %c0_6 = arith.constant 0 : index
    %c0_7 = arith.constant 0 : index
    %c0_8 = arith.constant 0 : index
    %9 = vector.load %arg4[%c0_6, %c0_7, %c0_8] : memref<1x8x256xf32, #tpu.memory_space<vmem>>, vector<1x8x256xf32>
    %10 = vector.shape_cast %9 : vector<1x8x256xf32> to vector<8x256xf32>
    %11 = vector.shape_cast %8 : vector<8x256xf32> to vector<1x8x256xf32>
    tpu.vector_store %arg4[%c0_6, %c0_7, %c0_8], %11 {strides = array<i32>} : memref<1x8x256xf32, #tpu.memory_space<vmem>>, vector<1x8x256xf32>,
    return
  }
  func.func @transform_0(%arg0: i32, %arg1: i32) -> (i32, i32, i32) {
    %c0_i32 = arith.constant 0 : i32
    %c0_i32_0 = arith.constant 0 : i32
    return %arg0, %c0_i32, %arg1 : i32, i32, i32
  }
  func.func @transform_1(%arg0: i32, %arg1: i32) -> (i32, i32) {
    %c0_i32 = arith.constant 0 : i32
    %c0_i32_0 = arith.constant 0 : i32
    %c0_i32_1 = arith.constant 0 : i32
    return %c0_i32, %c0_i32_0 : i32, i32
  }
  func.func @transform_2(%arg0: i32, %arg1: i32) -> (i32, i32, i32) {
    %c0_i32 = arith.constant 0 : i32
    %c0_i32_0 = arith.constant 0 : i32
    return %arg0, %c0_i32, %arg1 : i32, i32, i32
  }
}

</mosaic_0001>

<llo_original>
// kernel: tpu_custom_call.1
$region0: #{tpu_custom_call.1}
  #allocation0 [shape = 'u32[]', space=smem, size = 0x4, offset = 0x4, fixed_abs, tag = 'smem constant byte address 0x4 - core index']
  #allocation1 [shape = 'u32[72,128]{1,0:T(1,128)}', space=vmem, size = 0x9000, scoped, tag = 'internal scratch']
  %s0 = inlined_call_operand.hbm [shape: bf16[2,16,1089], index: 0, kind: input, shape index: {}]
  %s1 = inlined_call_operand.hbm [shape: bf16[8,16], index: 1, kind: input, shape index: {}]
  %s2 = inlined_call_operand.hbm [shape: f32[2,8,1089], index: 2, kind: output, shape index: {}]
  %s3 = sld [smem:[#allocation0]]
  $region49: #{tpu_custom_call.1} parent=0
    _
  %s5 = ssub.s32 1, %s3
  %s6 = scalar_select 0, %s5, %s3
  $region1: #{tpu_custom_call.1} parent=0
    #allocation2 [shape = 'u8[16384]{0}', space=vmem, size = 0x4000, scoped, tag = 'input window, operand 0']
    #allocation3 [shape = 's32[2]{0}', space=sflag, size = 0x8, scoped, tag = 'scoped memory for tpu_custom_call.1']
    #allocation4 [shape = 's32[2]{0}', space=sflag, size = 0x8, scoped, tag = 'scoped memory for tpu_custom_call.1']
    #allocation5 [shape = 'u8[2048]{0}', space=vmem, size = 0x800, scoped, tag = 'input window, operand 1, single buffered']
    #allocation6 [shape = 's32[1]{0}', space=sflag, size = 0x4, scoped, tag = 'scoped memory for tpu_custom_call.1']
    #allocation7 [shape = 'u8[16384]{0}', space=vmem, size = 0x4000, scoped, tag = 'output window, operand 0']
    %7 = vsyncpa [#allocation3], 0
    %s8 = scalar_lea.sflag [#allocation3], 1
    %9 = vsyncpa %s8, 0
    %10 = vsyncpa [#allocation6], 0
    %11 = vsyncpa [#allocation4], 0
    %s12 = scalar_lea.sflag [#allocation4], 1
    %13 = vsyncpa %s12, 0
    loop: start=0, step=1, limit=12
    $region2: #{tpu_custom_call.1} parent=1 // loop_pre_header
      _
    $region3: #{tpu_custom_call.1} parent=1 // loop_header
      %s15 = sphi 0, %s19
      %p16 = scmp.ge.s32.totalorder %s15, 12
      %s22 = sphi 0, %s34
      %s23 = sphi 0, %s30
      %s24 = sphi 0, %s22
      %s25 = sphi 0, %s23
      %s26 = sphi 0, %s24
      %s27 = sphi 0, %s25
      %s39 = sphi 0, %s41
      %s42 = sphi 0, %s39
      %s43 = sphi 0, %s42
      %s59 = sphi 0, %s43
      %s63 = sphi 0, %s63
      %s65 = sphi 0, %s63
      %s66 = sphi 0, %s65
      %s80 = sphi 0, %s66
      %s88 = sphi 0, %s90
      %s91 = sphi 0, %s88
      %s92 = sphi 0, %s91
      %s108 = sphi 0, %s92
    $region4: #{tpu_custom_call.1} parent=1 // loop_header_branch
      %18 = sbr.rel (%p16) target = $region8
    $region5: #{tpu_custom_call.1} parent=1 // loop_body
      %s20 = ssub.s32 %s15, 1
      %s21 = ssub.s32 %s15, 2
      %s28 = sadd.s32 1, %s23
      %p29 = scmp.ge.s32.totalorder %s28, 5
      %s30 = scalar_select %p29, 0, %s28
      %s31 = sadd.s32 1, %s22
      %s32 = scalar_select %p29, %s31, %s22
      %p33 = scmp.ge.s32.totalorder %s32, 2
      %s34 = scalar_select %p33, 0, %s32
      %s35 = ssub.s32 %s22, %s34
      %s36 = ssub.s32 %s23, %s30
      %s37 = sor.u32 %s35, %s36
      %p38 = scmp.eq.s32.totalorder %s37, 0
      %s40 = sadd.s32 %s39, 1
      %s41 = scalar_select %p38, %s39, %s40
      %p44 = pneg %p38
      %p45 = scmp.eq.s32.totalorder %s15, 9
      %p46 = por %p44, %p45
      %p47 = scmp.ne.s32.totalorder %s39, %s42
      %p48 = scmp.eq.s32.totalorder %s15, 0
      %p49 = por %p47, %p48
      %p50 = scmp.ne.s32.totalorder %s39, %s42
      %p51 = scmp.eq.s32.totalorder %s20, 9
      %p52 = por %p50, %p51
      %p53 = scmp.ne.s32.totalorder %s42, %s43
      %p54 = scmp.eq.s32.totalorder %s20, 0
      %p55 = por %p53, %p54
      %p56 = scmp.ne.s32.totalorder %s42, %s43
      %p57 = scmp.eq.s32.totalorder %s21, 9
      %p58 = por %p56, %p57
      %p60 = scmp.ne.s32.totalorder %s43, %s59
      %p61 = scmp.eq.s32.totalorder %s21, 0
      %p62 = por %p60, %p61
      %s64 = sadd.s32 %s63, 1
      %p67 = scmp.eq.s32.totalorder %s15, 9
      %p68 = scmp.ne.s32.totalorder %s63, %s65
      %p69 = scmp.eq.s32.totalorder %s15, 0
      %p70 = por %p68, %p69
      %p71 = scmp.ne.s32.totalorder %s63, %s65
      %p72 = scmp.eq.s32.totalorder %s20, 9
      %p73 = por %p71, %p72
      %p74 = scmp.ne.s32.totalorder %s65, %s66
      %p75 = scmp.eq.s32.totalorder %s20, 0
      %p76 = por %p74, %p75
      %p77 = scmp.ne.s32.totalorder %s65, %s66
      %p78 = scmp.eq.s32.totalorder %s21, 9
      %p79 = por %p77, %p78
      %p81 = scmp.ne.s32.totalorder %s66, %s80
      %p82 = scmp.eq.s32.totalorder %s21, 0
      %p83 = por %p81, %p82
      %s84 = ssub.s32 %s22, %s34
      %s85 = ssub.s32 %s23, %s30
      %s86 = sor.u32 %s84, %s85
      %p87 = scmp.eq.s32.totalorder %s86, 0
      %s89 = sadd.s32 %s88, 1
      %s90 = scalar_select %p87, %s88, %s89
      %p93 = pneg %p87
      %p94 = scmp.eq.s32.totalorder %s15, 9
      %p95 = por %p93, %p94
      %p96 = scmp.ne.s32.totalorder %s88, %s91
      %p97 = scmp.eq.s32.totalorder %s15, 0
      %p98 = por %p96, %p97
      %p99 = scmp.ne.s32.totalorder %s88, %s91
      %p100 = scmp.eq.s32.totalorder %s20, 9
      %p101 = por %p99, %p100
      %p102 = scmp.ne.s32.totalorder %s91, %s92
      %p103 = scmp.eq.s32.totalorder %s20, 0
      %p104 = por %p102, %p103
      %p105 = scmp.ne.s32.totalorder %s91, %s92
      %p106 = scmp.eq.s32.totalorder %s21, 9
      %p107 = por %p105, %p106
      %p109 = scmp.ne.s32.totalorder %s92, %s108
      %p110 = scmp.eq.s32.totalorder %s21, 0
      %p111 = por %p109, %p110
      %p112 = scmp.le.s32.totalorder 1, %s15
      %p113 = scmp.lt.s32.totalorder %s15, 11
      %p114 = pnand %p112, %p113
      %p115 = pneg %p114
      // Predicated region
      $region9: #{tpu_custom_call.1} parent=5 // pred_check
        _
      $region10: #{tpu_custom_call.1} parent=5 // pred_check_branch
        %117 = sbr.rel (%p114) target = $region12
      $region11: #{tpu_custom_call.1} parent=5 // pred_region
        %s118 = ssub.s32 %s15, 1
        // Predicated region
        $region13: #{tpu_custom_call.1} parent=11 // pred_check
          %p119 = pneg %p76
        $region14: #{tpu_custom_call.1} parent=11 // pred_check_branch
          %121 = sbr.rel (%p119) target = $region16
        $region15: #{tpu_custom_call.1} parent=11 // pred_region
          %123 = vsyncadd [#allocation6], 0
          %s125 = sshll.u32 %s1, 4
          %s126 = int_to_ptr.hbm [resolvable:$true] %s125
          %s127 = sshll.u32 [#allocation5], 4
          %s128 = int_to_ptr.vmem [resolvable:$true] %s127
          %130 = dma.hbm_to_vmem [thread:$0]  %s126, 64, %s128, [#allocation6]
        $region16: #{tpu_custom_call.1} parent=11 // pred_fallthru
          _
      $region12: #{tpu_custom_call.1} parent=5 // pred_fallthru
        _
      %p131 = scmp.lt.s32.totalorder %s15, 10
      // Predicated region
      $region17: #{tpu_custom_call.1} parent=5 // pred_check
        %p132 = pneg %p131
      $region18: #{tpu_custom_call.1} parent=5 // pred_check_branch
        %134 = sbr.rel (%p132) target = $region20
      $region19: #{tpu_custom_call.1} parent=5 // pred_region
        // Predicated region
        $region21: #{tpu_custom_call.1} parent=19 // pred_check
          %p135 = pneg %p49
        $region22: #{tpu_custom_call.1} parent=19 // pred_check_branch
          %137 = sbr.rel (%p135) target = $region24
        $region23: #{tpu_custom_call.1} parent=19 // pred_region
          %s138 = sand.u32 %s39, 1
          %s139 = scalar_lea.sflag [#allocation3], %s138
          %s140 = sand.u32 %s39, 1
          %s141 = smul.addr %s140, 16
          %s142 = scalar_lea.vmem [#allocation2], %s141
          %s143 = smul.u32 2, %s23
          %s144 = ssub.s32 9, %s143
          %p145 = scmp.lt.s32.totalorder %s144, 2
          %s146 = scalar_select %p145, %s144, 2
          %s147 = smul.u32 8, %s146
          %s148 = ssub.s32 16, %s147
          %s149 = sshll.u32 %s148, 4
          %150 = vsyncadd %s139, %s149
          %p151 = scmp.ne.s32.totalorder 0, %s147
          %s152 = smul.addr %s22, 18
          %s153 = sadd.s32 %s143, %s152
          %s154 = smul.addr %s153, 4
          %s155 = scalar_lea.hbm %s0, %s154
          %s156 = smul.u32 %s146, 4
          %s157 = smul.u32 %s156, 2
          %s158 = sshll.u32 %s155, 4
          %s159 = int_to_ptr.hbm [resolvable:$true] %s158
          %s160 = sshll.u32 %s142, 4
          %s161 = int_to_ptr.vmem [resolvable:$true] %s160
          %s162 = sshll.u32 %s157, 4
          %166 = dma.hbm_to_vmem [thread:$0]  (%p151), %s159, %s162, %s161, %s139, 576, 128, %s156
        $region24: #{tpu_custom_call.1} parent=19 // pred_fallthru
          _
      $region20: #{tpu_custom_call.1} parent=5 // pred_fallthru
        _
      %p167 = scmp.le.s32.totalorder 1, %s15
      %p168 = scmp.lt.s32.totalorder %s15, 11
      %p169 = pnand %p167, %p168
      %p170 = pneg %p169
      // Predicated region
      $region25: #{tpu_custom_call.1} parent=5 // pred_check
        _
      $region26: #{tpu_custom_call.1} parent=5 // pred_check_branch
        %172 = sbr.rel (%p169) target = $region28
      $region27: #{tpu_custom_call.1} parent=5 // pred_region
        %s173 = ssub.s32 %s15, 1
        %s174 = sand.u32 %s42, 1
        %s175 = scalar_lea.sflag [#allocation3], %s174
        %s176 = sand.u32 %s42, 1
        %s177 = smul.addr %s176, 16
        %s178 = scalar_lea.vmem [#allocation2], %s177
        // Predicated region
        $region29: #{tpu_custom_call.1} parent=27 // pred_check
          %p179 = pneg %p55
        $region30: #{tpu_custom_call.1} parent=27 // pred_check_branch
          %181 = sbr.rel (%p179) target = $region32
        $region31: #{tpu_custom_call.1} parent=27 // pred_region
          %183 = dma.done %s175, 256
        $region32: #{tpu_custom_call.1} parent=27 // pred_fallthru
          _
        // Predicated region
        $region33: #{tpu_custom_call.1} parent=27 // pred_check
          %p184 = pneg %p76
        $region34: #{tpu_custom_call.1} parent=27 // pred_check_branch
          %186 = sbr.rel (%p184) target = $region36
        $region35: #{tpu_custom_call.1} parent=27 // pred_region
          %188 = dma.done [#allocation6], 64
        $region36: #{tpu_custom_call.1} parent=27 // pred_fallthru
          _
        %s189 = sand.u32 %s42, 1
        %s190 = scalar_lea.sflag [#allocation3], %s189
        %s191 = sand.u32 %s42, 1
        %s192 = smul.addr %s191, 16
        %s193 = scalar_lea.vmem [#allocation2], %s192
        %p194 = pneg %p55
        %p195 = pneg %p52
        %p196 = pneg %p76
        %p197 = pneg %p73
        %p198 = pneg %p104
        %p199 = pneg %p101
        %s200 = sand.u32 %s91, 1
        %s201 = scalar_lea.sflag [#allocation4], %s200
        %s202 = sand.u32 %s91, 1
        %s203 = smul.addr %s202, 16
        %s204 = scalar_lea.vmem [#allocation7], %s203
        %s205 = smul.u32 2, %s25
        %s206 = ssub.s32 9, %s205
        %p207 = scmp.lt.s32.totalorder %s206, 2
        %s208 = scalar_select %p207, %s206, 2
        %s209 = smul.u32 8, %s208
        %s210 = smul.u32 2, %s25
        %s211 = ssub.s32 9, %s210
        %p212 = scmp.lt.s32.totalorder %s211, 2
        %s213 = scalar_select %p212, %s211, 2
        %s214 = smul.u32 8, %s213
        %v216 = vld [vmem:[#allocation5] sm:$0xf]
        %v217 = vld [vmem:[%s178] sm:$0xff]
        %v218 = vld [vmem:[%s178 + $0x8] sm:$0xff]
        %v221 = vunpack.c.l.b16 %v217
        %v222 = vunpack.c.h.b16 %v217
        %v223 = vunpack.c.l.b16 %v218
        %v224 = vunpack.c.h.b16 %v218
        %v225 = vpack.c.b16 %v223, %v221
        %v226 = vpack.c.b16 %v224, %v222
        %vm229 = vcmask 130048
        %v231 = vsel %vm229, %v216, 0
        %233 = vmatpush.bf16.msra.mxu0 0
        %234 = vmatpush.bf16.msra.mxu0 0
        %235 = vmatpush.bf16.msra.mxu0 0
        %236 = vmatpush.bf16.msra.mxu0 0
        %237 = vmatpush.bf16.msra.mxu0 0
        %238 = vmatpush.bf16.msra.mxu0 0
        %239 = vmatpush.bf16.msra.mxu0 0
        %240 = vmatpush.bf16.msra.mxu0 %v225
        %241 = vmatmul.bf16.gmra.mxu0 %v231
        %v242 = vpop.f32.mrf.mxu0
        %v243 = vadd.f32 0.0, %v242
        %v244 = vpop.f32.mrf.mxu0
        %245 = vdwg.mxu0
        %246 = vmatpush.bf16.msra.mxu0 0
        %247 = vmatpush.bf16.msra.mxu0 0
        %248 = vmatpush.bf16.msra.mxu0 0
        %249 = vmatpush.bf16.msra.mxu0 0
        %250 = vmatpush.bf16.msra.mxu0 0
        %251 = vmatpush.bf16.msra.mxu0 0
        %252 = vmatpush.bf16.msra.mxu0 0
        %253 = vmatpush.bf16.msra.mxu0 %v226
        %254 = vmatmul.bf16.gmra.mxu0 %v231
        %v255 = vpop.f32.mrf.mxu0
        %v256 = vadd.f32 0.0, %v255
        %v257 = vpop.f32.mrf.mxu0
        %258 = vdwg.mxu0
        %vm259 = vcmp.ge.f32.partialorder %v243, 0.0
        %vm260 = vcmp.ge.f32.partialorder %v256, 0.0
        %v261 = vmul.f32 %v243, 0.2
        %v262 = vmul.f32 %v256, 0.2
        %v263 = vsel %vm259, %v243, %v261
        %v264 = vsel %vm260, %v256, %v262
        %265 = vst [vmem:[%s204] sm:$0xff] %v263
        %266 = vst [vmem:[%s204 + $0x8] sm:$0xff] %v264
        %s267 = sand.u32 %s91, 1
        %s268 = scalar_lea.sflag [#allocation4], %s267
        %s269 = sand.u32 %s91, 1
        %s270 = smul.addr %s269, 16
        %s271 = scalar_lea.vmem [#allocation7], %s270
        // Predicated region
        $region37: #{tpu_custom_call.1} parent=27 // pred_check
          %p272 = pneg %p101
        $region38: #{tpu_custom_call.1} parent=27 // pred_check_branch
          %274 = sbr.rel (%p272) target = $region40
        $region39: #{tpu_custom_call.1} parent=27 // pred_region
          %s275 = smul.u32 2, %s25
          %s276 = ssub.s32 9, %s275
          %p277 = scmp.lt.s32.totalorder %s276, 2
          %s278 = scalar_select %p277, %s276, 2
          %s279 = smul.u32 8, %s278
          %s280 = ssub.s32 16, %s279
          %s281 = sshll.u32 %s280, 4
          %282 = vsyncadd %s268, %s281
          %p283 = scmp.ne.s32.totalorder 0, %s279
          %s284 = smul.addr %s24, 9
          %s285 = sadd.s32 %s275, %s284
          %s286 = smul.addr %s285, 8
          %s287 = scalar_lea.hbm %s2, %s286
          %s288 = smul.u32 %s278, 8
          %s289 = sshll.u32 %s288, 4
          %s290 = sshll.u32 %s271, 4
          %s291 = int_to_ptr.vmem [resolvable:$true] %s290
          %s292 = sshll.u32 %s287, 4
          %s293 = int_to_ptr.hbm [resolvable:$true] %s292
          %295 = dma.vmem_to_hbm [thread:$0]  (%p283), %s291, %s289, %s293, %s268
        $region40: #{tpu_custom_call.1} parent=27 // pred_fallthru
          _
      $region28: #{tpu_custom_call.1} parent=5 // pred_fallthru
        _
      %p296 = scmp.le.s32.totalorder 2, %s15
      // Predicated region
      $region41: #{tpu_custom_call.1} parent=5 // pred_check
        %p297 = pneg %p296
      $region42: #{tpu_custom_call.1} parent=5 // pred_check_branch
        %299 = sbr.rel (%p297) target = $region44
      $region43: #{tpu_custom_call.1} parent=5 // pred_region
        %s300 = ssub.s32 %s15, 2
        // Predicated region
        $region45: #{tpu_custom_call.1} parent=43 // pred_check
          %p301 = pneg %p107
        $region46: #{tpu_custom_call.1} parent=43 // pred_check_branch
          %303 = sbr.rel (%p301) target = $region48
        $region47: #{tpu_custom_call.1} parent=43 // pred_region
          %s304 = sand.u32 %s92, 1
          %s305 = scalar_lea.sflag [#allocation4], %s304
          %s306 = sand.u32 %s92, 1
          %s307 = smul.addr %s306, 16
          %s308 = scalar_lea.vmem [#allocation7], %s307
          %310 = dma.done %s305, 256
        $region48: #{tpu_custom_call.1} parent=43 // pred_fallthru
          _
      $region44: #{tpu_custom_call.1} parent=5 // pred_fallthru
        _
    $region6: #{tpu_custom_call.1} parent=1 // loop_footer
      %s19 = sadd.s32 1, %s15
    $region7: #{tpu_custom_call.1} parent=1 // loop_footer_branch
      %14 = sbr.rel target = $region3
    $region8: #{tpu_custom_call.1} parent=1 // loop_exit
      _
    %311 = vsyncpa [#allocation3], 1
    %s312 = scalar_lea.sflag [#allocation3], 1
    %313 = vsyncpa %s312, 1
    %314 = vsyncpa [#allocation6], 1
    %315 = vsyncpa [#allocation4], 1
    %s316 = scalar_lea.sflag [#allocation4], 1
    %317 = vsyncpa %s316, 1

</llo_original>
